<compile_context>
chip_gen: v7x
topology: tpu7x:2x2x1
jax: 0.10.0
libtpu: 0.0.40
codegen_flags: <defaults>
</compile_context>

<pallas_src>
import functools

import jax
import jax.numpy as jnp
import numpy as np
from jax.experimental import pallas as pl
from jax.experimental.pallas import tpu as pltpu


# --------------------------------------------------------------------------- #
# Helpers
# --------------------------------------------------------------------------- #
def _round_up(x, m):
    return ((x + m - 1) // m) * m


def _round_down(x, m):
    return (x // m) * m


def _vmem_budget_bytes():
    """Physical VMEM per TensorCore; conservative (v7x, 64 MiB) fallback."""
    try:
        v = int(pltpu.get_tpu_info().vmem_capacity_bytes)
        if v > 0:
            return v
    except Exception:
        pass
    return 64 * 1024 * 1024


# --------------------------------------------------------------------------- #
# Fused kernel: one grid step per batch row, x[b] read from HBM exactly once.
# --------------------------------------------------------------------------- #
def _fused_kernel(x_ref, w1t_ref, b1_ref, w2_ref, b2_ref, lam_ref, init_ref,
                  o_ref, *, k, inv_hw):
    """Grid (B,). x_ref/o_ref: (C, HW) f32 (batch dim squeezed)."""
    x = x_ref[...]                                             # (C, HW) resident

    # Spatial mean per channel; keep channels on sublanes (no relayout).
    theta = jnp.sum(x, axis=-1, keepdims=True) * inv_hw        # (C, 1)

    # fc1 -> relu -> fc2 via VPU broadcast-multiply + reductions (M=1 MXU
    # matmuls would have ~1/128 row utilization for no gain).
    h = jnp.sum(theta * w1t_ref[...], axis=0, keepdims=True)   # (1, Cr)
    h = jnp.maximum(h + b1_ref[...], 0.0)
    z = jnp.sum(w2_ref[...] * h, axis=-1, keepdims=True)       # (2k, 1)
    z = z + b2_ref[...]
    # 2*sigmoid(z) - 1 == tanh(z/2): single EUP op.
    coef = jnp.tanh(0.5 * z) * lam_ref[...] + init_ref[...]    # (2k, 1)

    # k-way max of affine pieces, reusing the resident x.
    res = x * coef[0:1, 0:1] + coef[k:k + 1, 0:1]
    for j in range(1, k):
        res = jnp.maximum(res, x * coef[j:j + 1, 0:1] + coef[k + j:k + j + 1, 0:1])
    o_ref[...] = res


# --------------------------------------------------------------------------- #
# Fallback pass 1: streamed per-batch channel sums (rows too big for VMEM).
# --------------------------------------------------------------------------- #
def _sum_kernel(x_ref, sum_ref, *, hw, thw, mask_tail):
    """Grid (B, cdiv(HW, thw)). x_ref: (1, C, thw); sum_ref: (1, C, 1)."""
    t = pl.program_id(1)

    @pl.when(t == 0)
    def _():
        sum_ref[...] = jnp.zeros_like(sum_ref)

    x = x_ref[...]
    if mask_tail:
        # Last tile may be partially out of bounds -> zero the padded lanes.
        lane = jax.lax.broadcasted_iota(jnp.int32, x.shape, 2) + t * thw
        x = jnp.where(lane < hw, x, 0.0)
    sum_ref[...] += jnp.sum(x, axis=-1, keepdims=True)


# --------------------------------------------------------------------------- #
# Fallback pass 2: HBM-bound elementwise k-way affine max on 2D tiles.
# --------------------------------------------------------------------------- #
def _apply_kernel(x_ref, coef_ref, o_ref, *, k):
    """x_ref/o_ref: (TR, TL); coef_ref: (TR, 2k) per-row coefficients."""
    x = x_ref[...]
    coef = coef_ref[...]
    res = x * coef[:, 0:1] + coef[:, k:k + 1]
    for j in range(1, k):
        res = jnp.maximum(res, x * coef[:, j:j + 1] + coef[:, k + j:k + j + 1])
    o_ref[...] = res


# --------------------------------------------------------------------------- #
# Wrapper
# --------------------------------------------------------------------------- #
def dyrelu_a_forward(x, params, *, k=2):
    """x: (B, C, H, W) float32. Returns (B, C, H, W) float32."""
    w1, b1, w2, b2, lambdas, init_v = params
    B, C, H, W = x.shape
    HW = H * W
    N = C * HW
    Cr = w1.shape[0]
    twok = 2 * k

    xf = x.astype(jnp.float32)
    x3 = xf.reshape(B, C, HW)                    # bitcast under jit

    budget = _vmem_budget_bytes()                # 64 MiB on v7x, 128 on v5e/v6e
    vmem_limit = max(32 << 20, min((budget * 3) // 4, 96 << 20))
    row_bytes = C * HW * 4
    # Fused path needs double-buffered x-in and out rows (+ tiny weights).
    fused_ok = 4 * row_bytes + (2 << 20) <= vmem_limit

    if fused_ok:
        # Tiny parameter tensors, laid out so the in-kernel MLP needs no
        # transposes: w1.T (C, Cr), w2 (2k, Cr), biases/lambdas as columns.
        w1t = w1.T                               # (C, Cr)
        b1r = b1.reshape(1, Cr)
        b2c = b2.reshape(twok, 1)
        lamc = lambdas.reshape(twok, 1)
        initc = init_v.reshape(twok, 1)

        out3 = pl.pallas_call(
            functools.partial(_fused_kernel, k=k, inv_hw=1.0 / HW),
            out_shape=jax.ShapeDtypeStruct((B, C, HW), jnp.float32),
            grid=(B,),
            in_specs=[
                pl.BlockSpec((None, C, HW), lambda b: (b, 0, 0)),
                pl.BlockSpec((C, Cr), lambda b: (0, 0)),
                pl.BlockSpec((1, Cr), lambda b: (0, 0)),
                pl.BlockSpec((twok, Cr), lambda b: (0, 0)),
                pl.BlockSpec((twok, 1), lambda b: (0, 0)),
                pl.BlockSpec((twok, 1), lambda b: (0, 0)),
                pl.BlockSpec((twok, 1), lambda b: (0, 0)),
            ],
            out_specs=pl.BlockSpec((None, C, HW), lambda b: (b, 0, 0)),
            compiler_params=pltpu.CompilerParams(
                dimension_semantics=("parallel",),
                vmem_limit_bytes=vmem_limit),
        )(x3, w1t, b1r, w2, b2c, lamc, initc)
        return out3.reshape(B, C, H, W)

    # ---------------------------------------------------------------------- #
    # Fallback: two passes (rows too large to keep resident in VMEM).
    # ---------------------------------------------------------------------- #
    # Pass 1: streamed per-batch channel sums with large lane-dense tiles.
    blk1_cap = (8 << 20) if budget >= (100 << 20) else (4 << 20)
    thw = max(128, min(_round_up(HW, 128),
                       max(128, _round_down(blk1_cap // (4 * C), 128))))
    sums3 = pl.pallas_call(
        functools.partial(_sum_kernel, hw=HW, thw=thw,
                          mask_tail=(HW % thw != 0)),
        out_shape=jax.ShapeDtypeStruct((B, C, 1), jnp.float32),
        grid=(B, pl.cdiv(HW, thw)),
        in_specs=[pl.BlockSpec((1, C, thw), lambda b, t: (b, 0, t))],
        out_specs=pl.BlockSpec((1, C, 1), lambda b, t: (b, 0, 0)),
        compiler_params=pltpu.CompilerParams(
            dimension_semantics=("parallel", "arbitrary"),
            vmem_limit_bytes=vmem_limit),
    )(x3)

    # Tiny MLP hoisted to plain JAX: one batched (B,C)x(C,Cr) matmul instead of
    # B separate M=1 matmuls inside the kernel.
    theta = sums3[:, :, 0] * (1.0 / HW)                       # (B, C)
    h = jnp.maximum(theta @ w1.T + b1, 0.0)                   # (B, Cr)
    z = h @ w2.T + b2                                         # (B, 2k)
    coefs = jnp.tanh(0.5 * z) * lambdas + init_v              # (B, 2k)

    # Pass 2: k-way affine max on lane-dense 2D tiles.  For small B, re-lay
    # out rows per (batch, channel) so every (8,128) vreg is fully occupied.
    if B < 8 and HW % 128 == 0:
        R, L = B * C, HW
        x2 = xf.reshape(R, L)
        coef_rows = jnp.repeat(coefs, C, axis=0)              # (B*C, 2k)
    else:
        R, L = B, N
        x2 = xf.reshape(R, L)
        coef_rows = coefs

    blk2_cap = (4 << 20) if budget >= (100 << 20) else (2 << 20)
    tl = min(_round_up(L, 128), max(128, _round_down(blk2_cap // (4 * 8), 128)))
    if R <= 8:
        tr = R
    else:
        tr = min(_round_up(R, 8), max(8, _round_down(blk2_cap // (4 * tl), 8)))

    out2 = pl.pallas_call(
        functools.partial(_apply_kernel, k=k),
        out_shape=jax.ShapeDtypeStruct((R, L), jnp.float32),
        grid=(pl.cdiv(R, tr), pl.cdiv(L, tl)),
        in_specs=[
            pl.BlockSpec((tr, tl), lambda ri, li: (ri, li)),
            pl.BlockSpec((tr, twok), lambda ri, li: (ri, 0)),
        ],
        out_specs=pl.BlockSpec((tr, tl), lambda ri, li: (ri, li)),
        compiler_params=pltpu.CompilerParams(
            dimension_semantics=("parallel", "parallel"),
            vmem_limit_bytes=vmem_limit),
    )(x2, coef_rows)
    return out2.reshape(B, C, H, W)


# --------------------------------------------------------------------------- #
# Parameter init + pure-JAX reference (for validation)
# --------------------------------------------------------------------------- #
def init_params(key, channels, reduction=4, k=2):
    """Deterministic init mimicking nn.Linear defaults (U(-1/sqrt(fan_in), .))."""
    cr = channels // reduction
    k1, k2, k3, k4 = jax.random.split(key, 4)
    bound1 = 1.0 / np.sqrt(channels)
    bound2 = 1.0 / np.sqrt(cr)
    w1 = jax.random.uniform(k1, (cr, channels), jnp.float32, -bound1, bound1)
    b1 = jax.random.uniform(k2, (cr,), jnp.float32, -bound1, bound1)
    w2 = jax.random.uniform(k3, (2 * k, cr), jnp.float32, -bound2, bound2)
    b2 = jax.random.uniform(k4, (2 * k,), jnp.float32, -bound2, bound2)
    lambdas = jnp.array([1.0] * k + [0.5] * k, jnp.float32)
    init_v = jnp.array([1.0] + [0.0] * (2 * k - 1), jnp.float32)
    return (w1, b1, w2, b2, lambdas, init_v)


def reference_forward(x, params, k=2):
    """Pure-JAX transcription of the PyTorch DyReLUA.forward."""
    w1, b1, w2, b2, lambdas, init_v = params
    theta = jnp.mean(jnp.mean(x, axis=-1), axis=-1)           # (B, C)
    theta = jnp.maximum(theta @ w1.T + b1, 0.0)
    theta = theta @ w2.T + b2
    theta = 2.0 * jax.nn.sigmoid(theta) - 1.0
    relu_coefs = theta * lambdas + init_v                     # (B, 2k)
    a = relu_coefs[:, :k]
    bb = relu_coefs[:, k:]
    cand = (x[..., None] * a[:, None, None, None, :]
            + bb[:, None, None, None, :])                     # (B,C,H,W,k)
    return jnp.max(cand, axis=-1)


if __name__ == "__main__":
    B, C, H, W = 2, 4, 16, 16
    k = 2
    key = jax.random.PRNGKey(0)
    kx, kp = jax.random.split(key)
    x = jax.random.normal(kx, (B, C, H, W), jnp.float32)
    params = init_params(kp, C, reduction=4, k=k)

    fwd = jax.jit(functools.partial(dyrelu_a_forward, k=k))
    out = jax.block_until_ready(fwd(x, params))

    ref = jax.block_until_ready(reference_forward(x, params, k=k))
    np.testing.assert_allclose(np.asarray(out), np.asarray(ref),
                               rtol=1e-5, atol=1e-5)
    print("KERNEL_OK")
</pallas_src>

<mosaic_0001>
module attributes {stable_mosaic.version = 11 : i64} {
  func.func @_fused_kernel(%arg0: i32, %arg1: memref<1x4x256xf32, #tpu.memory_space<vmem>>, %arg2: memref<4x1xf32, #tpu.memory_space<vmem>>, %arg3: memref<1x1xf32, #tpu.memory_space<vmem>>, %arg4: memref<4x1xf32, #tpu.memory_space<vmem>>, %arg5: memref<4x1xf32, #tpu.memory_space<vmem>>, %arg6: memref<4x1xf32, #tpu.memory_space<vmem>>, %arg7: memref<4x1xf32, #tpu.memory_space<vmem>>, %arg8: memref<1x4x256xf32, #tpu.memory_space<vmem>>) attributes {dimension_semantics = [#tpu.dimension_semantics<parallel>], iteration_bounds = array<i64: 2>, scalar_prefetch = 0 : i64, scratch_operands = 0 : i64, tpu.core_type = #tpu.core_type<tc>, window_params = [{transform_indices = @transform_0, window_bounds = array<i64: 1, 4, 256>}, {pipeline_mode = #tpu.pipeline_mode<synchronous>, transform_indices = @transform_1, window_bounds = array<i64: 4, 1>}, {pipeline_mode = #tpu.pipeline_mode<synchronous>, transform_indices = @transform_2, window_bounds = array<i64: 1, 1>}, {pipeline_mode = #tpu.pipeline_mode<synchronous>, transform_indices = @transform_3, window_bounds = array<i64: 4, 1>}, {pipeline_mode = #tpu.pipeline_mode<synchronous>, transform_indices = @transform_4, window_bounds = array<i64: 4, 1>}, {pipeline_mode = #tpu.pipeline_mode<synchronous>, transform_indices = @transform_5, window_bounds = array<i64: 4, 1>}, {pipeline_mode = #tpu.pipeline_mode<synchronous>, transform_indices = @transform_6, window_bounds = array<i64: 4, 1>}, {transform_indices = @transform_7, window_bounds = array<i64: 1, 4, 256>}]} {
    %c0 = arith.constant 0 : index
    %c0_0 = arith.constant 0 : index
    %c0_1 = arith.constant 0 : index
    %0 = vector.load %arg1[%c0, %c0_0, %c0_1] : memref<1x4x256xf32, #tpu.memory_space<vmem>>, vector<1x4x256xf32>
    %1 = vector.shape_cast %0 : vector<1x4x256xf32> to vector<4x256xf32>
    %cst = arith.constant dense<0.000000e+00> : vector<4xf32>
    %2 = vector.multi_reduction <add>, %1, %cst [1] : vector<4x256xf32> to vector<4xf32>
    %3 = vector.shape_cast %2 : vector<4xf32> to vector<4x1xf32>
    %cst_2 = arith.constant 3.906250e-03 : f32
    %4 = vector.broadcast %cst_2 : f32 to vector<4x1xf32>
    %5 = arith.mulf %3, %4 : vector<4x1xf32>
    %c0_3 = arith.constant 0 : index
    %c0_4 = arith.constant 0 : index
    %6 = vector.load %arg2[%c0_3, %c0_4] : memref<4x1xf32, #tpu.memory_space<vmem>>, vector<4x1xf32>
    %7 = arith.mulf %5, %6 : vector<4x1xf32>
    %cst_5 = arith.constant dense<0.000000e+00> : vector<1xf32>
    %8 = vector.multi_reduction <add>, %7, %cst_5 [0] : vector<4x1xf32> to vector<1xf32>
    %9 = vector.shape_cast %8 : vector<1xf32> to vector<1x1xf32>
    %c0_6 = arith.constant 0 : index
    %c0_7 = arith.constant 0 : index
    %10 = vector.load %arg3[%c0_6, %c0_7] : memref<1x1xf32, #tpu.memory_space<vmem>>, vector<1x1xf32>
    %11 = arith.addf %9, %10 : vector<1x1xf32>
    %cst_8 = arith.constant 0.000000e+00 : f32
    %12 = vector.broadcast %cst_8 : f32 to vector<1x1xf32>
    %13 = arith.maximumf %11, %12 : vector<1x1xf32>
    %c0_9 = arith.constant 0 : index
    %c0_10 = arith.constant 0 : index
    %14 = vector.load %arg4[%c0_9, %c0_10] : memref<4x1xf32, #tpu.memory_space<vmem>>, vector<4x1xf32>
    %15 = vector.broadcast %13 : vector<1x1xf32> to vector<4x1xf32>
    %16 = arith.mulf %14, %15 : vector<4x1xf32>
    %cst_11 = arith.constant dense<0.000000e+00> : vector<4xf32>
    %17 = vector.multi_reduction <add>, %16, %cst_11 [1] : vector<4x1xf32> to vector<4xf32>
    %18 = vector.shape_cast %17 : vector<4xf32> to vector<4x1xf32>
    %c0_12 = arith.constant 0 : index
    %c0_13 = arith.constant 0 : index
    %19 = vector.load %arg5[%c0_12, %c0_13] : memref<4x1xf32, #tpu.memory_space<vmem>>, vector<4x1xf32>
    %20 = arith.addf %18, %19 : vector<4x1xf32>
    %cst_14 = arith.constant 5.000000e-01 : f32
    %21 = vector.broadcast %cst_14 : f32 to vector<4x1xf32>
    %22 = arith.mulf %21, %20 : vector<4x1xf32>
    %23 = math.tanh %22 : vector<4x1xf32>
    %c0_15 = arith.constant 0 : index
    %c0_16 = arith.constant 0 : index
    %24 = vector.load %arg6[%c0_15, %c0_16] : memref<4x1xf32, #tpu.memory_space<vmem>>, vector<4x1xf32>
    %25 = arith.mulf %23, %24 : vector<4x1xf32>
    %c0_17 = arith.constant 0 : index
    %c0_18 = arith.constant 0 : index
    %26 = vector.load %arg7[%c0_17, %c0_18] : memref<4x1xf32, #tpu.memory_space<vmem>>, vector<4x1xf32>
    %27 = arith.addf %25, %26 : vector<4x1xf32>
    %28 = vector.extract_strided_slice %27 {offsets = [0, 0], sizes = [1, 1], strides = [1, 1]} : vector<4x1xf32> to vector<1x1xf32>
    %29 = vector.broadcast %28 : vector<1x1xf32> to vector<4x256xf32>
    %30 = arith.mulf %1, %29 : vector<4x256xf32>
    %31 = vector.extract_strided_slice %27 {offsets = [2, 0], sizes = [1, 1], strides = [1, 1]} : vector<4x1xf32> to vector<1x1xf32>
    %32 = vector.broadcast %31 : vector<1x1xf32> to vector<4x256xf32>
    %33 = arith.addf %30, %32 : vector<4x256xf32>
    %34 = vector.extract_strided_slice %27 {offsets = [1, 0], sizes = [1, 1], strides = [1, 1]} : vector<4x1xf32> to vector<1x1xf32>
    %35 = vector.broadcast %34 : vector<1x1xf32> to vector<4x256xf32>
    %36 = arith.mulf %1, %35 : vector<4x256xf32>
    %37 = vector.extract_strided_slice %27 {offsets = [3, 0], sizes = [1, 1], strides = [1, 1]} : vector<4x1xf32> to vector<1x1xf32>
    %38 = vector.broadcast %37 : vector<1x1xf32> to vector<4x256xf32>
    %39 = arith.addf %36, %38 : vector<4x256xf32>
    %40 = arith.maximumf %33, %39 : vector<4x256xf32>
    %c0_19 = arith.constant 0 : index
    %c0_20 = arith.constant 0 : index
    %c0_21 = arith.constant 0 : index
    %41 = vector.load %arg8[%c0_19, %c0_20, %c0_21] : memref<1x4x256xf32, #tpu.memory_space<vmem>>, vector<1x4x256xf32>
    %42 = vector.shape_cast %41 : vector<1x4x256xf32> to vector<4x256xf32>
    %43 = vector.shape_cast %40 : vector<4x256xf32> to vector<1x4x256xf32>
    tpu.vector_store %arg8[%c0_19, %c0_20, %c0_21], %43 {strides = array<i32>} : memref<1x4x256xf32, #tpu.memory_space<vmem>>, vector<1x4x256xf32>,
    return
  }
  func.func @transform_0(%arg0: i32) -> (i32, i32, i32) {
    %c0_i32 = arith.constant 0 : i32
    %c0_i32_0 = arith.constant 0 : i32
    %c0_i32_1 = arith.constant 0 : i32
    return %arg0, %c0_i32, %c0_i32_0 : i32, i32, i32
  }
  func.func @transform_1(%arg0: i32) -> (i32, i32) {
    %c0_i32 = arith.constant 0 : i32
    %c0_i32_0 = arith.constant 0 : i32
    %c0_i32_1 = arith.constant 0 : i32
    return %c0_i32, %c0_i32_0 : i32, i32
  }
  func.func @transform_2(%arg0: i32) -> (i32, i32) {
    %c0_i32 = arith.constant 0 : i32
    %c0_i32_0 = arith.constant 0 : i32
    %c0_i32_1 = arith.constant 0 : i32
    return %c0_i32, %c0_i32_0 : i32, i32
  }
  func.func @transform_3(%arg0: i32) -> (i32, i32) {
    %c0_i32 = arith.constant 0 : i32
    %c0_i32_0 = arith.constant 0 : i32
    %c0_i32_1 = arith.constant 0 : i32
    return %c0_i32, %c0_i32_0 : i32, i32
  }
  func.func @transform_4(%arg0: i32) -> (i32, i32) {
    %c0_i32 = arith.constant 0 : i32
    %c0_i32_0 = arith.constant 0 : i32
    %c0_i32_1 = arith.constant 0 : i32
    return %c0_i32, %c0_i32_0 : i32, i32
  }
  func.func @transform_5(%arg0: i32) -> (i32, i32) {
    %c0_i32 = arith.constant 0 : i32
    %c0_i32_0 = arith.constant 0 : i32
    %c0_i32_1 = arith.constant 0 : i32
    return %c0_i32, %c0_i32_0 : i32, i32
  }
  func.func @transform_6(%arg0: i32) -> (i32, i32) {
    %c0_i32 = arith.constant 0 : i32
    %c0_i32_0 = arith.constant 0 : i32
    %c0_i32_1 = arith.constant 0 : i32
    return %c0_i32, %c0_i32_0 : i32, i32
  }
  func.func @transform_7(%arg0: i32) -> (i32, i32, i32) {
    %c0_i32 = arith.constant 0 : i32
    %c0_i32_0 = arith.constant 0 : i32
    %c0_i32_1 = arith.constant 0 : i32
    return %arg0, %c0_i32, %c0_i32_0 : i32, i32, i32
  }
}

</mosaic_0001>

<llo_original>
// kernel: dyrelu_a_forward.1
$region0: #{dyrelu_a_forward.1}
  #allocation0 [shape = 'u32[]', space=smem, size = 0x4, offset = 0x4, fixed_abs, tag = 'smem constant byte address 0x4 - core index']
  #allocation1 [shape = 'u32[144,128]{1,0:T(1,128)}', space=vmem, size = 0x12000, scoped, tag = 'internal scratch']
  #allocation2 [shape = 'f32[1,1]{1,0:T(1,128)S(1)}', space=vmem, size = 0x200, scoped, tag = 'scoped memory for dyrelu_a_forward.1']
  %s0 = inlined_call_operand.vmem [shape: f32[2,4,256], index: 0, kind: input, shape index: {}]
  %s1 = inlined_call_operand.vmem [shape: f32[4,1], index: 1, kind: input, shape index: {}]
  %s2 = inlined_call_operand.<no memory space> [shape: f32[1,1], index: 2, kind: input, shape index: {}]
  %s3 = inlined_call_operand.vmem [shape: f32[4,1], index: 3, kind: input, shape index: {}]
  %s4 = inlined_call_operand.vmem [shape: f32[4,1], index: 4, kind: input, shape index: {}]
  %s5 = inlined_call_operand.vmem [shape: f32[4,1], index: 5, kind: input, shape index: {}]
  %s6 = inlined_call_operand.vmem [shape: f32[4,1], index: 6, kind: input, shape index: {}]
  %s7 = inlined_call_operand.vmem [shape: f32[2,4,256], index: 7, kind: output, shape index: {}]
  %s8 = sld [smem:[#allocation0]]
  $region61: #{dyrelu_a_forward.1} parent=0
    _
  %s10 = ssub.s32 1, %s8
  %s11 = scalar_select 0, %s10, %s8
  %v12 = vstv %s2
  %13 = vst [vmem:[#allocation2] sm:$0x1] %v12
  loop: start=0, step=1, limit=4
  $region2: #{dyrelu_a_forward.1} parent=0 // loop_pre_header
    _
  $region3: #{dyrelu_a_forward.1} parent=0 // loop_header
    %s15 = sphi 0, %s19
    %p16 = scmp.ge.s32.totalorder %s15, 4
    %s25 = sphi 0, %s27
    %s28 = sphi 0, %s25
    %s29 = sphi 0, %s28
    %s45 = sphi 0, %s29
    %s49 = sphi 0, %s49
    %s51 = sphi 0, %s49
    %s52 = sphi 0, %s51
    %s66 = sphi 0, %s52
    %s70 = sphi 0, %s70
    %s72 = sphi 0, %s70
    %s73 = sphi 0, %s72
    %s87 = sphi 0, %s73
    %s91 = sphi 0, %s91
    %s93 = sphi 0, %s91
    %s94 = sphi 0, %s93
    %s108 = sphi 0, %s94
    %s112 = sphi 0, %s112
    %s114 = sphi 0, %s112
    %s115 = sphi 0, %s114
    %s129 = sphi 0, %s115
    %s133 = sphi 0, %s133
    %s135 = sphi 0, %s133
    %s136 = sphi 0, %s135
    %s150 = sphi 0, %s136
    %s154 = sphi 0, %s154
    %s156 = sphi 0, %s154
    %s157 = sphi 0, %s156
    %s171 = sphi 0, %s157
    %s177 = sphi 0, %s179
    %s180 = sphi 0, %s177
    %s181 = sphi 0, %s180
    %s197 = sphi 0, %s181
  $region4: #{dyrelu_a_forward.1} parent=0 // loop_header_branch
    %18 = sbr.rel (%p16) target = $region8
  $region5: #{dyrelu_a_forward.1} parent=0 // loop_body
    %s20 = ssub.s32 %s15, 1
    %s21 = ssub.s32 %s15, 2
    %s22 = sadd.s32 %s15, 1
    %s23 = ssub.s32 %s15, %s22
    %p24 = scmp.eq.s32.totalorder %s23, 0
    %s26 = sadd.s32 %s25, 1
    %s27 = scalar_select %p24, %s25, %s26
    %p30 = pneg %p24
    %p31 = scmp.eq.s32.totalorder %s15, 1
    %p32 = por %p30, %p31
    %p33 = scmp.ne.s32.totalorder %s25, %s28
    %p34 = scmp.eq.s32.totalorder %s15, 0
    %p35 = por %p33, %p34
    %p36 = scmp.ne.s32.totalorder %s25, %s28
    %p37 = scmp.eq.s32.totalorder %s20, 1
    %p38 = por %p36, %p37
    %p39 = scmp.ne.s32.totalorder %s28, %s29
    %p40 = scmp.eq.s32.totalorder %s20, 0
    %p41 = por %p39, %p40
    %p42 = scmp.ne.s32.totalorder %s28, %s29
    %p43 = scmp.eq.s32.totalorder %s21, 1
    %p44 = por %p42, %p43
    %p46 = scmp.ne.s32.totalorder %s29, %s45
    %p47 = scmp.eq.s32.totalorder %s21, 0
    %p48 = por %p46, %p47
    %s50 = sadd.s32 %s49, 1
    %p53 = scmp.eq.s32.totalorder %s15, 1
    %p54 = scmp.ne.s32.totalorder %s49, %s51
    %p55 = scmp.eq.s32.totalorder %s15, 0
    %p56 = por %p54, %p55
    %p57 = scmp.ne.s32.totalorder %s49, %s51
    %p58 = scmp.eq.s32.totalorder %s20, 1
    %p59 = por %p57, %p58
    %p60 = scmp.ne.s32.totalorder %s51, %s52
    %p61 = scmp.eq.s32.totalorder %s20, 0
    %p62 = por %p60, %p61
    %p63 = scmp.ne.s32.totalorder %s51, %s52
    %p64 = scmp.eq.s32.totalorder %s21, 1
    %p65 = por %p63, %p64
    %p67 = scmp.ne.s32.totalorder %s52, %s66
    %p68 = scmp.eq.s32.totalorder %s21, 0
    %p69 = por %p67, %p68
    %s71 = sadd.s32 %s70, 1
    %p74 = scmp.eq.s32.totalorder %s15, 1
    %p75 = scmp.ne.s32.totalorder %s70, %s72
    %p76 = scmp.eq.s32.totalorder %s15, 0
    %p77 = por %p75, %p76
    %p78 = scmp.ne.s32.totalorder %s70, %s72
    %p79 = scmp.eq.s32.totalorder %s20, 1
    %p80 = por %p78, %p79
    %p81 = scmp.ne.s32.totalorder %s72, %s73
    %p82 = scmp.eq.s32.totalorder %s20, 0
    %p83 = por %p81, %p82
    %p84 = scmp.ne.s32.totalorder %s72, %s73
    %p85 = scmp.eq.s32.totalorder %s21, 1
    %p86 = por %p84, %p85
    %p88 = scmp.ne.s32.totalorder %s73, %s87
    %p89 = scmp.eq.s32.totalorder %s21, 0
    %p90 = por %p88, %p89
    %s92 = sadd.s32 %s91, 1
    %p95 = scmp.eq.s32.totalorder %s15, 1
    %p96 = scmp.ne.s32.totalorder %s91, %s93
    %p97 = scmp.eq.s32.totalorder %s15, 0
    %p98 = por %p96, %p97
    %p99 = scmp.ne.s32.totalorder %s91, %s93
    %p100 = scmp.eq.s32.totalorder %s20, 1
    %p101 = por %p99, %p100
    %p102 = scmp.ne.s32.totalorder %s93, %s94
    %p103 = scmp.eq.s32.totalorder %s20, 0
    %p104 = por %p102, %p103
    %p105 = scmp.ne.s32.totalorder %s93, %s94
    %p106 = scmp.eq.s32.totalorder %s21, 1
    %p107 = por %p105, %p106
    %p109 = scmp.ne.s32.totalorder %s94, %s108
    %p110 = scmp.eq.s32.totalorder %s21, 0
    %p111 = por %p109, %p110
    %s113 = sadd.s32 %s112, 1
    %p116 = scmp.eq.s32.totalorder %s15, 1
    %p117 = scmp.ne.s32.totalorder %s112, %s114
    %p118 = scmp.eq.s32.totalorder %s15, 0
    %p119 = por %p117, %p118
    %p120 = scmp.ne.s32.totalorder %s112, %s114
    %p121 = scmp.eq.s32.totalorder %s20, 1
    %p122 = por %p120, %p121
    %p123 = scmp.ne.s32.totalorder %s114, %s115
    %p124 = scmp.eq.s32.totalorder %s20, 0
    %p125 = por %p123, %p124
    %p126 = scmp.ne.s32.totalorder %s114, %s115
    %p127 = scmp.eq.s32.totalorder %s21, 1
    %p128 = por %p126, %p127
    %p130 = scmp.ne.s32.totalorder %s115, %s129
    %p131 = scmp.eq.s32.totalorder %s21, 0
    %p132 = por %p130, %p131
    %s134 = sadd.s32 %s133, 1
    %p137 = scmp.eq.s32.totalorder %s15, 1
    %p138 = scmp.ne.s32.totalorder %s133, %s135
    %p139 = scmp.eq.s32.totalorder %s15, 0
    %p140 = por %p138, %p139
    %p141 = scmp.ne.s32.totalorder %s133, %s135
    %p142 = scmp.eq.s32.totalorder %s20, 1
    %p143 = por %p141, %p142
    %p144 = scmp.ne.s32.totalorder %s135, %s136
    %p145 = scmp.eq.s32.totalorder %s20, 0
    %p146 = por %p144, %p145
    %p147 = scmp.ne.s32.totalorder %s135, %s136
    %p148 = scmp.eq.s32.totalorder %s21, 1
    %p149 = por %p147, %p148
    %p151 = scmp.ne.s32.totalorder %s136, %s150
    %p152 = scmp.eq.s32.totalorder %s21, 0
    %p153 = por %p151, %p152
    %s155 = sadd.s32 %s154, 1
    %p158 = scmp.eq.s32.totalorder %s15, 1
    %p159 = scmp.ne.s32.totalorder %s154, %s156
    %p160 = scmp.eq.s32.totalorder %s15, 0
    %p161 = por %p159, %p160
    %p162 = scmp.ne.s32.totalorder %s154, %s156
    %p163 = scmp.eq.s32.totalorder %s20, 1
    %p164 = por %p162, %p163
    %p165 = scmp.ne.s32.totalorder %s156, %s157
    %p166 = scmp.eq.s32.totalorder %s20, 0
    %p167 = por %p165, %p166
    %p168 = scmp.ne.s32.totalorder %s156, %s157
    %p169 = scmp.eq.s32.totalorder %s21, 1
    %p170 = por %p168, %p169
    %p172 = scmp.ne.s32.totalorder %s157, %s171
    %p173 = scmp.eq.s32.totalorder %s21, 0
    %p174 = por %p172, %p173
    %s175 = ssub.s32 %s15, %s22
    %p176 = scmp.eq.s32.totalorder %s175, 0
    %s178 = sadd.s32 %s177, 1
    %s179 = scalar_select %p176, %s177, %s178
    %p182 = pneg %p176
    %p183 = scmp.eq.s32.totalorder %s15, 1
    %p184 = por %p182, %p183
    %p185 = scmp.ne.s32.totalorder %s177, %s180
    %p186 = scmp.eq.s32.totalorder %s15, 0
    %p187 = por %p185, %p186
    %p188 = scmp.ne.s32.totalorder %s177, %s180
    %p189 = scmp.eq.s32.totalorder %s20, 1
    %p190 = por %p188, %p189
    %p191 = scmp.ne.s32.totalorder %s180, %s181
    %p192 = scmp.eq.s32.totalorder %s20, 0
    %p193 = por %p191, %p192
    %p194 = scmp.ne.s32.totalorder %s180, %s181
    %p195 = scmp.eq.s32.totalorder %s21, 1
    %p196 = por %p194, %p195
    %p198 = scmp.ne.s32.totalorder %s181, %s197
    %p199 = scmp.eq.s32.totalorder %s21, 0
    %p200 = por %p198, %p199
    %p201 = scmp.le.s32.totalorder 1, %s15
    %p202 = scmp.lt.s32.totalorder %s15, 3
    %p203 = pnand %p201, %p202
    %p204 = pneg %p203
    // Predicated region
    $region9: #{dyrelu_a_forward.1} parent=5 // pred_check
      _
    $region10: #{dyrelu_a_forward.1} parent=5 // pred_check_branch
      %206 = sbr.rel (%p203) target = $region12
    $region11: #{dyrelu_a_forward.1} parent=5 // pred_region
      %s207 = ssub.s32 %s15, 1
      // Predicated region
      $region13: #{dyrelu_a_forward.1} parent=11 // pred_check
        %p208 = pneg %p62
      $region14: #{dyrelu_a_forward.1} parent=11 // pred_check_branch
        %210 = sbr.rel (%p208) target = $region16
      $region15: #{dyrelu_a_forward.1} parent=11 // pred_region
        _
      $region16: #{dyrelu_a_forward.1} parent=11 // pred_fallthru
        _
      // Predicated region
      $region17: #{dyrelu_a_forward.1} parent=11 // pred_check
        %p211 = pneg %p83
      $region18: #{dyrelu_a_forward.1} parent=11 // pred_check_branch
        %213 = sbr.rel (%p211) target = $region20
      $region19: #{dyrelu_a_forward.1} parent=11 // pred_region
        _
      $region20: #{dyrelu_a_forward.1} parent=11 // pred_fallthru
        _
      // Predicated region
      $region21: #{dyrelu_a_forward.1} parent=11 // pred_check
        %p214 = pneg %p104
      $region22: #{dyrelu_a_forward.1} parent=11 // pred_check_branch
        %216 = sbr.rel (%p214) target = $region24
      $region23: #{dyrelu_a_forward.1} parent=11 // pred_region
        _
      $region24: #{dyrelu_a_forward.1} parent=11 // pred_fallthru
        _
      // Predicated region
      $region25: #{dyrelu_a_forward.1} parent=11 // pred_check
        %p217 = pneg %p125
      $region26: #{dyrelu_a_forward.1} parent=11 // pred_check_branch
        %219 = sbr.rel (%p217) target = $region28
      $region27: #{dyrelu_a_forward.1} parent=11 // pred_region
        _
      $region28: #{dyrelu_a_forward.1} parent=11 // pred_fallthru
        _
      // Predicated region
      $region29: #{dyrelu_a_forward.1} parent=11 // pred_check
        %p220 = pneg %p146
      $region30: #{dyrelu_a_forward.1} parent=11 // pred_check_branch
        %222 = sbr.rel (%p220) target = $region32
      $region31: #{dyrelu_a_forward.1} parent=11 // pred_region
        _
      $region32: #{dyrelu_a_forward.1} parent=11 // pred_fallthru
        _
      // Predicated region
      $region33: #{dyrelu_a_forward.1} parent=11 // pred_check
        %p223 = pneg %p167
      $region34: #{dyrelu_a_forward.1} parent=11 // pred_check_branch
        %225 = sbr.rel (%p223) target = $region36
      $region35: #{dyrelu_a_forward.1} parent=11 // pred_region
        _
      $region36: #{dyrelu_a_forward.1} parent=11 // pred_fallthru
        _
    $region12: #{dyrelu_a_forward.1} parent=5 // pred_fallthru
      _
    %p226 = scmp.lt.s32.totalorder %s15, 2
    // Predicated region
    $region37: #{dyrelu_a_forward.1} parent=5 // pred_check
      %p227 = pneg %p226
    $region38: #{dyrelu_a_forward.1} parent=5 // pred_check_branch
      %229 = sbr.rel (%p227) target = $region40
    $region39: #{dyrelu_a_forward.1} parent=5 // pred_region
      // Predicated region
      $region41: #{dyrelu_a_forward.1} parent=39 // pred_check
        %p230 = pneg %p35
      $region42: #{dyrelu_a_forward.1} parent=39 // pred_check_branch
        %232 = sbr.rel (%p230) target = $region44
      $region43: #{dyrelu_a_forward.1} parent=39 // pred_region
        %p233 = scmp.lt.s32.totalorder %s15, 1
        %s234 = scalar_select %p233, %s15, 1
        %s235 = smul.addr %s234, 2
        %s236 = smul.addr %s235, 4
        %s237 = scalar_lea.vmem %s0, %s236
      $region44: #{dyrelu_a_forward.1} parent=39 // pred_fallthru
        _
    $region40: #{dyrelu_a_forward.1} parent=5 // pred_fallthru
      _
    %p238 = scmp.le.s32.totalorder 1, %s15
    %p239 = scmp.lt.s32.totalorder %s15, 3
    %p240 = pnand %p238, %p239
    %p241 = pneg %p240
    // Predicated region
    $region45: #{dyrelu_a_forward.1} parent=5 // pred_check
      _
    $region46: #{dyrelu_a_forward.1} parent=5 // pred_check_branch
      %243 = sbr.rel (%p240) target = $region48
    $region47: #{dyrelu_a_forward.1} parent=5 // pred_region
      %s244 = ssub.s32 %s15, 1
      %p245 = scmp.lt.s32.totalorder %s20, 1
      %s246 = scalar_select %p245, %s20, 1
      %s247 = smul.addr %s246, 2
      %s248 = smul.addr %s247, 4
      %s249 = scalar_lea.vmem %s0, %s248
      %p250 = pneg %p41
      %p251 = pneg %p38
      %p252 = pneg %p62
      %p253 = pneg %p59
      %p254 = pneg %p83
      %p255 = pneg %p80
      %p256 = pneg %p104
      %p257 = pneg %p101
      %p258 = pneg %p125
      %p259 = pneg %p122
      %p260 = pneg %p146
      %p261 = pneg %p143
      %p262 = pneg %p167
      %p263 = pneg %p164
      %p264 = pneg %p193
      %p265 = pneg %p190
      %p266 = scmp.lt.s32.totalorder %s20, 1
      %s267 = scalar_select %p266, %s20, 1
      %s268 = smul.addr %s267, 2
      %s269 = smul.addr %s268, 4
      %s270 = scalar_lea.vmem %s7, %s269
      %p271 = scmp.lt.s32.totalorder %s20, 1
      %s272 = scalar_select %p271, %s20, 1
      %s273 = smul.addr %s272, 2
      %s274 = smul.addr %s273, 4
      %s275 = scalar_lea.vmem %s0, %s274
      %p276 = scmp.lt.s32.totalorder %s20, 1
      %s277 = scalar_select %p276, %s20, 1
      %s278 = smul.addr %s277, 2
      %s279 = smul.addr %s278, 4
      %s280 = scalar_lea.vmem %s7, %s279
      %v281 = vld [vmem:[%s275] sm:$0xff]
      %v283 = vcombine.high %v281, %v281
      %vm285 = vcmask 1043456
      %v286 = vsel %vm285, %v281, 0.0
      %v287 = vsel %vm285, %v283, 0.0
      %v288 = vadd.f32 %v286, %v287
      %289 = vadd.xlane.f32.xlu0 %v288
      %v290 = vpop.xlane.xlu0 %289
      %v291 = vmul.f32 %v290, 0.00390625
      %v292 = vld [vmem:[%s1] sm:$0xf]
      %v293 = vmul.f32 %v291, %v292
      %vm294 = vcmask 3072
      %v295 = vsel %vm294, %v293, 0.0
      %v296 = vrot.slane %v295, 4
      %v297 = vadd.f32 %v295, %v296
      %v298 = vrot.slane %v297, 2
      %v299 = vadd.f32 %v297, %v298
      %v300 = vrot.slane %v299, 1
      %v301 = vadd.f32 %v299, %v300
      %v302 = vld [vmem:[#allocation2] sm:$0x1]
      %v303 = vadd.f32 %v301, %v302
      %v304 = vmax.f32 %v303, 0.0
      %v305 = vld [vmem:[%s3] sm:$0xf]
      %v306 = vlaneseq
      %v307 = vshrl.u32 %v306, 7
      %v308 = vsub.s32 0, %v307
      %v309 = vrot.slane %v304, %v308
      %v310 = vmul.f32 %v305, %v309
      %v311 = vadd.f32 %v310, 0.0
      %v312 = vld [vmem:[%s4] sm:$0xf]
      %v313 = vadd.f32 %v311, %v312
      %v314 = vmul.f32 %v313, 0.5
      %v315 = vtanh.pop %v314
      %v316 = vld [vmem:[%s5] sm:$0xf]
      %v317 = vmul.f32 %v315, %v316
      %v318 = vld [vmem:[%s6] sm:$0xf]
      %v319 = vadd.f32 %v317, %v318
      %s321 = vtos %v319
      %v322 = vstv %s321
      %v324 = vmul.f32 %v281, %v322
      %v325 = vrot.slane %v319, 2
      %s326 = vtos %v325
      %v327 = vstv %s326
      %v329 = vadd.f32 %v324, %v327
      %v330 = vrot.slane %v319, 1
      %s331 = vtos %v330
      %v332 = vstv %s331
      %v334 = vmul.f32 %v281, %v332
      %v335 = vrot.slane %v319, 3
      %s336 = vtos %v335
      %v337 = vstv %s336
      %v339 = vadd.f32 %v334, %v337
      %v340 = vmax.f32 %v329, %v339
      %341 = vst [vmem:[%s280] sm:$0xff] %v340
      %p342 = scmp.lt.s32.totalorder %s20, 1
      %s343 = scalar_select %p342, %s20, 1
      %s344 = smul.addr %s343, 2
      %s345 = smul.addr %s344, 4
      %s346 = scalar_lea.vmem %s7, %s345
      // Predicated region
      $region49: #{dyrelu_a_forward.1} parent=47 // pred_check
        %p347 = pneg %p190
      $region50: #{dyrelu_a_forward.1} parent=47 // pred_check_branch
        %349 = sbr.rel (%p347) target = $region52
      $region51: #{dyrelu_a_forward.1} parent=47 // pred_region
        _
      $region52: #{dyrelu_a_forward.1} parent=47 // pred_fallthru
        _
    $region48: #{dyrelu_a_forward.1} parent=5 // pred_fallthru
      _
    %p350 = scmp.le.s32.totalorder 2, %s15
    // Predicated region
    $region53: #{dyrelu_a_forward.1} parent=5 // pred_check
      %p351 = pneg %p350
    $region54: #{dyrelu_a_forward.1} parent=5 // pred_check_branch
      %353 = sbr.rel (%p351) target = $region56
    $region55: #{dyrelu_a_forward.1} parent=5 // pred_region
      %s354 = ssub.s32 %s15, 2
      // Predicated region
      $region57: #{dyrelu_a_forward.1} parent=55 // pred_check
        %p355 = pneg %p196
      $region58: #{dyrelu_a_forward.1} parent=55 // pred_check_branch
        %357 = sbr.rel (%p355) target = $region60
      $region59: #{dyrelu_a_forward.1} parent=55 // pred_region
        %p358 = scmp.lt.s32.totalorder %s21, 1
        %s359 = scalar_select %p358, %s21, 1
        %s360 = smul.addr %s359, 2
        %s361 = smul.addr %s360, 4
        %s362 = scalar_lea.vmem %s7, %s361
      $region60: #{dyrelu_a_forward.1} parent=55 // pred_fallthru
        _
    $region56: #{dyrelu_a_forward.1} parent=5 // pred_fallthru
      _
  $region6: #{dyrelu_a_forward.1} parent=0 // loop_footer
    %s19 = sadd.s32 1, %s15
  $region7: #{dyrelu_a_forward.1} parent=0 // loop_footer_branch
    %14 = sbr.rel target = $region3
  $region8: #{dyrelu_a_forward.1} parent=0 // loop_exit
    _

</llo_original>
